<compile_context>
chip_gen: v7x
topology: tpu7x:2x2x1
jax: 0.10.0
libtpu: 0.0.40
codegen_flags: <defaults>
</compile_context>

<pallas_src>
import functools

import jax
import jax.numpy as jnp
from jax.experimental import pallas as pl
from jax.experimental.pallas import tpu as pltpu


def _transition_kernel(x_ref, w_ref, shift_ref, out_ref, *, n_phases):
    """One grid step == one lane tile of the collapsed (batch*spatial) axis.

    x_ref     : (n_phases, C_in, Qb)  bf16  phase-leading pooled-tap layout
    w_ref     : (C_out, C_in)         bf16  conv weight with BN scale folded in
    shift_ref : (C_out, 1)            f32   folded BN shift
    out_ref   : (C_out, Qb)           f32
    """
    w = w_ref[...]
    shift = shift_ref[...]

    acc = jnp.zeros(out_ref.shape, jnp.float32)
    for p in range(n_phases):  # static unroll over the 4 pool taps
        # 1x1 conv (+ folded BN scale): lane-dense MXU matmul, f32 accumulate.
        y = jnp.dot(w, x_ref[p], preferred_element_type=jnp.float32)
        # Folded BN shift + ReLU in f32 (VPU), then accumulate for the pool.
        acc = acc + jnp.maximum(y + shift, 0.0)

    out_ref[...] = (acc * (1.0 / n_phases)).astype(out_ref.dtype)


def _round_up(x, m):
    return (x + m - 1) // m * m


def transition_block(x_nchw, weight_oihw, gamma, beta, running_mean,
                     running_var, *, eps=1e-5,
                     lane_budget_bytes=24 << 20, max_qb=4096):
    """Forward of TransitionBlock (eval-mode BN).

    x_nchw      : (N, C_in, H, W)  float32
    weight_oihw : (C_out, C_in, 1, 1)
    returns     : (N, C_out, H//2, W//2)  float32
    """
    N, C_in, H, W = x_nchw.shape
    C_out = weight_oihw.shape[0]
    assert weight_oihw.shape == (C_out, C_in, 1, 1), weight_oihw.shape
    assert H % 2 == 0 and W % 2 == 0, "even H, W required (see TODO)"
    Ho, Wo = H // 2, W // 2
    Q = Ho * Wo
    L = N * Q  # batch collapsed into the lane axis

    # ---- host glue: fold BN (eval mode) in f32, then cast weight to bf16 ----
    scale = gamma / jnp.sqrt(running_var + eps)                     # (C_out,)
    shift = beta - running_mean * scale                             # (C_out,)
    w_folded = (weight_oihw[:, :, 0, 0].astype(jnp.float32)
                * scale[:, None]).astype(jnp.bfloat16)              # (C_out, C_in)
    shift2d = shift.reshape(C_out, 1).astype(jnp.float32)           # keep f32

    # Phase-leading, batch-collapsed layout:  (4, C_in, N*Ho*Wo), bf16.
    #   phase = 2*dh + dw ,  lane = n*Q + r*Wo + c
    x_ph = (x_nchw.reshape(N, C_in, Ho, 2, Wo, 2)
            .transpose(3, 5, 1, 0, 2, 4)
            .reshape(4, C_in, L)
            .astype(jnp.bfloat16))

    # Lane-tile size: biggest multiple of 128 so that double-buffered bf16
    # inputs + double-buffered f32 outputs fit the VMEM budget (v7x-safe).
    per_lane_bytes = 2 * (4 * C_in * 2) + 2 * (C_out * 4)
    qb = max(128, (lane_budget_bytes // per_lane_bytes) // 128 * 128)
    qb = min(qb, max_qb)
    qb = min(qb, _round_up(L, 128))

    L_pad = _round_up(L, qb)
    if L_pad != L:
        x_ph = jnp.pad(x_ph, ((0, 0), (0, 0), (0, L_pad - L)))
    n_tiles = L_pad // qb

    kernel = functools.partial(_transition_kernel, n_phases=4)

    out = pl.pallas_call(
        kernel,
        out_shape=jax.ShapeDtypeStruct((C_out, L_pad), jnp.float32),
        grid_spec=pltpu.PrefetchScalarGridSpec(
            num_scalar_prefetch=0,
            grid=(n_tiles,),
            in_specs=[
                pl.BlockSpec((4, C_in, qb), lambda i: (0, 0, i)),
                pl.BlockSpec((C_out, C_in), lambda i: (0, 0)),
                pl.BlockSpec((C_out, 1), lambda i: (0, 0)),
            ],
            out_specs=pl.BlockSpec((C_out, qb), lambda i: (0, i)),
        ),
        compiler_params=pltpu.CompilerParams(
            dimension_semantics=("parallel",),
            vmem_limit_bytes=32 << 20,
        ),
    )(x_ph, w_folded, shift2d)

    # (C_out, N*Q) -> (N, C_out, Ho, Wo)
    out = out[:, :L].reshape(C_out, N, Ho, Wo).transpose(1, 0, 2, 3)
    return out


def _reference(x_nchw, weight_oihw, gamma, beta, running_mean, running_var,
               eps=1e-5):
    """Pure-JAX f32 reference (eval-mode BN) for correctness check."""
    w2d = weight_oihw[:, :, 0, 0]
    y = jnp.einsum('oc,nchw->nohw', w2d, x_nchw)
    scale = gamma / jnp.sqrt(running_var + eps)
    shift = beta - running_mean * scale
    y = y * scale[None, :, None, None] + shift[None, :, None, None]
    y = jnp.maximum(y, 0.0)
    n, co, h, w = y.shape
    return y.reshape(n, co, h // 2, 2, w // 2, 2).mean(axis=(3, 5))


if __name__ == "__main__":
    # TransitionBlock(in_channels=4, out_channels=8) on (N=2, 4, 16, 16).
    N, C_in, H, W = 2, 4, 16, 16
    C_out = 8

    key = jax.random.PRNGKey(0)
    k_x, k_w, k_g, k_b, k_m, k_v = jax.random.split(key, 6)

    x = jax.random.normal(k_x, (N, C_in, H, W), dtype=jnp.float32)
    weight = jax.random.normal(k_w, (C_out, C_in, 1, 1), dtype=jnp.float32) * 0.1
    gamma = 1.0 + 0.1 * jax.random.normal(k_g, (C_out,), dtype=jnp.float32)
    beta = 0.1 * jax.random.normal(k_b, (C_out,), dtype=jnp.float32)
    running_mean = 0.1 * jax.random.normal(k_m, (C_out,), dtype=jnp.float32)
    running_var = jnp.abs(1.0 + 0.1 * jax.random.normal(k_v, (C_out,),
                                                        dtype=jnp.float32))

    out = transition_block(x, weight, gamma, beta, running_mean, running_var)
    out = jax.block_until_ready(out)

    ref = _reference(x, weight, gamma, beta, running_mean, running_var)
    assert out.shape == (N, C_out, H // 2, W // 2), out.shape
    # bf16 MXU inputs (f32 accumulation / f32 post-matmul math) -> small quant error.
    err = float(jnp.max(jnp.abs(out - ref)))
    assert err < 5e-2, err

    print("KERNEL_OK")
</pallas_src>

<mosaic_0001>
module attributes {stable_mosaic.version = 11 : i64} {
  func.func @_transition_kernel(%arg0: i32, %arg1: memref<4x4x128xbf16, #tpu.memory_space<vmem>>, %arg2: memref<8x4xbf16, #tpu.memory_space<vmem>>, %arg3: memref<8x1xf32, #tpu.memory_space<vmem>>, %arg4: memref<8x128xf32, #tpu.memory_space<vmem>>) attributes {dimension_semantics = [#tpu.dimension_semantics<parallel>], iteration_bounds = array<i64: 1>, scalar_prefetch = 0 : i64, scratch_operands = 0 : i64, tpu.core_type = #tpu.core_type<tc>, window_params = [{transform_indices = @transform_0, window_bounds = array<i64: 4, 4, 128>}, {pipeline_mode = #tpu.pipeline_mode<synchronous>, transform_indices = @transform_1, window_bounds = array<i64: 8, 4>}, {pipeline_mode = #tpu.pipeline_mode<synchronous>, transform_indices = @transform_2, window_bounds = array<i64: 8, 1>}, {transform_indices = @transform_3, window_bounds = array<i64: 8, 128>}]} {
    %c0 = arith.constant 0 : index
    %c0_0 = arith.constant 0 : index
    %0 = vector.load %arg2[%c0, %c0_0] : memref<8x4xbf16, #tpu.memory_space<vmem>>, vector<8x4xbf16>
    %c0_1 = arith.constant 0 : index
    %c0_2 = arith.constant 0 : index
    %1 = vector.load %arg3[%c0_1, %c0_2] : memref<8x1xf32, #tpu.memory_space<vmem>>, vector<8x1xf32>
    %cst = arith.constant 0.000000e+00 : f32
    %2 = vector.broadcast %cst : f32 to vector<8x128xf32>
    %c0_3 = arith.constant 0 : index
    %c0_4 = arith.constant 0 : index
    %c0_5 = arith.constant 0 : index
    %3 = vector.load %arg1[%c0_3, %c0_4, %c0_5] : memref<4x4x128xbf16, #tpu.memory_space<vmem>>, vector<1x4x128xbf16>
    %4 = vector.shape_cast %3 : vector<1x4x128xbf16> to vector<4x128xbf16>
    %cst_6 = arith.constant dense<0.000000e+00> : vector<8x128xf32>
    %5 = tpu.matmul %0, %4, %cst_6 {dimension_numbers = #tpu.dot_dimension_numbers<[1], [0], [0], [1], [0, 0, 1, 1], [], []>} : vector<8x4xbf16>, vector<4x128xbf16>, vector<8x128xf32> -> vector<8x128xf32>
    %6 = vector.broadcast %1 : vector<8x1xf32> to vector<8x128xf32>
    %7 = arith.addf %5, %6 : vector<8x128xf32>
    %cst_7 = arith.constant 0.000000e+00 : f32
    %8 = vector.broadcast %cst_7 : f32 to vector<8x128xf32>
    %9 = arith.maximumf %7, %8 : vector<8x128xf32>
    %10 = arith.addf %2, %9 : vector<8x128xf32>
    %c1 = arith.constant 1 : index
    %c0_8 = arith.constant 0 : index
    %c0_9 = arith.constant 0 : index
    %11 = vector.load %arg1[%c1, %c0_8, %c0_9] : memref<4x4x128xbf16, #tpu.memory_space<vmem>>, vector<1x4x128xbf16>
    %12 = vector.shape_cast %11 : vector<1x4x128xbf16> to vector<4x128xbf16>
    %cst_10 = arith.constant dense<0.000000e+00> : vector<8x128xf32>
    %13 = tpu.matmul %0, %12, %cst_10 {dimension_numbers = #tpu.dot_dimension_numbers<[1], [0], [0], [1], [0, 0, 1, 1], [], []>} : vector<8x4xbf16>, vector<4x128xbf16>, vector<8x128xf32> -> vector<8x128xf32>
    %14 = vector.broadcast %1 : vector<8x1xf32> to vector<8x128xf32>
    %15 = arith.addf %13, %14 : vector<8x128xf32>
    %cst_11 = arith.constant 0.000000e+00 : f32
    %16 = vector.broadcast %cst_11 : f32 to vector<8x128xf32>
    %17 = arith.maximumf %15, %16 : vector<8x128xf32>
    %18 = arith.addf %10, %17 : vector<8x128xf32>
    %c2 = arith.constant 2 : index
    %c0_12 = arith.constant 0 : index
    %c0_13 = arith.constant 0 : index
    %19 = vector.load %arg1[%c2, %c0_12, %c0_13] : memref<4x4x128xbf16, #tpu.memory_space<vmem>>, vector<1x4x128xbf16>
    %20 = vector.shape_cast %19 : vector<1x4x128xbf16> to vector<4x128xbf16>
    %cst_14 = arith.constant dense<0.000000e+00> : vector<8x128xf32>
    %21 = tpu.matmul %0, %20, %cst_14 {dimension_numbers = #tpu.dot_dimension_numbers<[1], [0], [0], [1], [0, 0, 1, 1], [], []>} : vector<8x4xbf16>, vector<4x128xbf16>, vector<8x128xf32> -> vector<8x128xf32>
    %22 = vector.broadcast %1 : vector<8x1xf32> to vector<8x128xf32>
    %23 = arith.addf %21, %22 : vector<8x128xf32>
    %cst_15 = arith.constant 0.000000e+00 : f32
    %24 = vector.broadcast %cst_15 : f32 to vector<8x128xf32>
    %25 = arith.maximumf %23, %24 : vector<8x128xf32>
    %26 = arith.addf %18, %25 : vector<8x128xf32>
    %c3 = arith.constant 3 : index
    %c0_16 = arith.constant 0 : index
    %c0_17 = arith.constant 0 : index
    %27 = vector.load %arg1[%c3, %c0_16, %c0_17] : memref<4x4x128xbf16, #tpu.memory_space<vmem>>, vector<1x4x128xbf16>
    %28 = vector.shape_cast %27 : vector<1x4x128xbf16> to vector<4x128xbf16>
    %cst_18 = arith.constant dense<0.000000e+00> : vector<8x128xf32>
    %29 = tpu.matmul %0, %28, %cst_18 {dimension_numbers = #tpu.dot_dimension_numbers<[1], [0], [0], [1], [0, 0, 1, 1], [], []>} : vector<8x4xbf16>, vector<4x128xbf16>, vector<8x128xf32> -> vector<8x128xf32>
    %30 = vector.broadcast %1 : vector<8x1xf32> to vector<8x128xf32>
    %31 = arith.addf %29, %30 : vector<8x128xf32>
    %cst_19 = arith.constant 0.000000e+00 : f32
    %32 = vector.broadcast %cst_19 : f32 to vector<8x128xf32>
    %33 = arith.maximumf %31, %32 : vector<8x128xf32>
    %34 = arith.addf %26, %33 : vector<8x128xf32>
    %cst_20 = arith.constant 2.500000e-01 : f32
    %35 = vector.broadcast %cst_20 : f32 to vector<8x128xf32>
    %36 = arith.mulf %34, %35 : vector<8x128xf32>
    %c0_21 = arith.constant 0 : index
    %c0_22 = arith.constant 0 : index
    %37 = vector.load %arg4[%c0_21, %c0_22] : memref<8x128xf32, #tpu.memory_space<vmem>>, vector<8x128xf32>
    tpu.vector_store %arg4[%c0_21, %c0_22], %36 {strides = array<i32>} : memref<8x128xf32, #tpu.memory_space<vmem>>, vector<8x128xf32>,
    return
  }
  func.func @transform_0(%arg0: i32) -> (i32, i32, i32) {
    %c0_i32 = arith.constant 0 : i32
    %c0_i32_0 = arith.constant 0 : i32
    %c0_i32_1 = arith.constant 0 : i32
    return %c0_i32, %c0_i32_0, %arg0 : i32, i32, i32
  }
  func.func @transform_1(%arg0: i32) -> (i32, i32) {
    %c0_i32 = arith.constant 0 : i32
    %c0_i32_0 = arith.constant 0 : i32
    %c0_i32_1 = arith.constant 0 : i32
    return %c0_i32, %c0_i32_0 : i32, i32
  }
  func.func @transform_2(%arg0: i32) -> (i32, i32) {
    %c0_i32 = arith.constant 0 : i32
    %c0_i32_0 = arith.constant 0 : i32
    %c0_i32_1 = arith.constant 0 : i32
    return %c0_i32, %c0_i32_0 : i32, i32
  }
  func.func @transform_3(%arg0: i32) -> (i32, i32) {
    %c0_i32 = arith.constant 0 : i32
    %c0_i32_0 = arith.constant 0 : i32
    return %c0_i32, %arg0 : i32, i32
  }
}

</mosaic_0001>

<llo_original>
// kernel: tpu_custom_call.1
$region0: #{tpu_custom_call.1}
  #allocation0 [shape = 'u32[]', space=smem, size = 0x4, offset = 0x4, fixed_abs, tag = 'smem constant byte address 0x4 - core index']
  #allocation1 [shape = 'u32[144,128]{1,0:T(1,128)}', space=vmem, size = 0x12000, scoped, tag = 'internal scratch']
  %s0 = inlined_call_operand.vmem [shape: bf16[4,4,128], index: 0, kind: input, shape index: {}]
  %s1 = inlined_call_operand.vmem [shape: bf16[8,4], index: 1, kind: input, shape index: {}]
  %s2 = inlined_call_operand.vmem [shape: f32[8,1], index: 2, kind: input, shape index: {}]
  %s3 = inlined_call_operand.hbm [shape: f32[8,128], index: 3, kind: output, shape index: {}]
  %s4 = sld [smem:[#allocation0]]
  $region22: #{tpu_custom_call.1} parent=0
    _
  %s6 = ssub.s32 1, %s4
  %s7 = scalar_select 0, %s6, %s4
  $region1: #{tpu_custom_call.1} parent=0
    #allocation2 [shape = 'u8[4096]{0}', space=vmem, size = 0x1000, scoped, tag = 'output window, operand 0, single buffered']
    #allocation3 [shape = 's32[1]{0}', space=sflag, size = 0x4, scoped, tag = 'scoped memory for tpu_custom_call.1']
    %8 = vsyncpa [#allocation3], 0
    // Predicated region
    $region2: #{tpu_custom_call.1} parent=1 // pred_check
      _
    $region3: #{tpu_custom_call.1} parent=1 // pred_check_branch
      %10 = sbr.rel (0) target = $region5
    $region4: #{tpu_custom_call.1} parent=1 // pred_region
      _
    $region5: #{tpu_custom_call.1} parent=1 // pred_fallthru
      _
    // Predicated region
    $region6: #{tpu_custom_call.1} parent=1 // pred_check
      _
    $region7: #{tpu_custom_call.1} parent=1 // pred_check_branch
      %12 = sbr.rel (0) target = $region9
    $region8: #{tpu_custom_call.1} parent=1 // pred_region
      _
    $region9: #{tpu_custom_call.1} parent=1 // pred_fallthru
      _
    // Predicated region
    $region10: #{tpu_custom_call.1} parent=1 // pred_check
      _
    $region11: #{tpu_custom_call.1} parent=1 // pred_check_branch
      %14 = sbr.rel (0) target = $region13
    $region12: #{tpu_custom_call.1} parent=1 // pred_region
      _
    $region13: #{tpu_custom_call.1} parent=1 // pred_fallthru
      _
    %v16 = vld [vmem:[%s1] sm:$0xf]
    %v17 = vld [vmem:[%s2] sm:$0xff]
    %v18 = vld [vmem:[%s0] sm:$0x3]
    %20 = vset.pattern.permute.xlu0 0
    %21 = vperm.xlu0 %20, %v17
    %v22 = vpop.permute.xlu0 %21
    %vm24 = vcmask 31744
    %v26 = vsel %vm24, %v16, 0
    %vm28 = vcmask 1041408
    %v30 = vsel %vm28, %v18, 0
    %32 = vmatprep.subr.bf16.mxu0 0
    %33 = vmatpush1.bf16.msra.mxu0 %v30
    %34 = vmatprep.subr.bf16.mxu0 0
    %35 = vmatpush1.bf16.msra.mxu0 0
    %36 = vmatprep.subr.bf16.mxu0 0
    %37 = vmatpush1.bf16.msra.mxu0 0
    %38 = vmatprep.subr.bf16.mxu0 0
    %39 = vmatpush1.bf16.msra.mxu0 0
    %40 = vmatprep.subr.bf16.mxu0 0
    %41 = vmatpush1.bf16.msra.mxu0 0
    %42 = vmatprep.subr.bf16.mxu0 0
    %43 = vmatpush1.bf16.msra.mxu0 0
    %44 = vmatprep.subr.bf16.mxu0 0
    %45 = vmatpush1.bf16.msra.mxu0 0
    %46 = vmatprep.subr.bf16.mxu0 0
    %47 = vmatpush1.bf16.msra.mxu0 0
    %48 = vmatprep.subr.bf16.mxu0 0
    %49 = vmatpush1.bf16.msra.mxu0 0
    %50 = vmatprep.subr.bf16.mxu0 0
    %51 = vmatpush1.bf16.msra.mxu0 0
    %52 = vmatprep.subr.bf16.mxu0 0
    %53 = vmatpush1.bf16.msra.mxu0 0
    %54 = vmatprep.subr.bf16.mxu0 0
    %55 = vmatpush1.bf16.msra.mxu0 0
    %56 = vmatprep.subr.bf16.mxu0 0
    %57 = vmatpush1.bf16.msra.mxu0 0
    %58 = vmatprep.subr.bf16.mxu0 0
    %59 = vmatpush1.bf16.msra.mxu0 0
    %60 = vmatprep.subr.bf16.mxu0 0
    %61 = vmatpush1.bf16.msra.mxu0 0
    %62 = vmatprep.subr.bf16.mxu0 0
    %63 = vmatpush1.bf16.msra.mxu0 0
    %64 = vmatprep.mubr.bf16.mxu0 0
    %65 = vmatmul.mubr.bf16.gmra.mrb[0].mxu0 %v26
    %v66 = vpop.f32.mrb[0].mxu0
    %v67 = vadd.f32 %v22, %v66
    %v68 = vpop.f32.mrb[0].mxu0
    %v69 = vpop.f32.mrb[0].mxu0
    %v70 = vpop.f32.mrb[0].mxu0
    %71 = vdwg.mxu0
    %v72 = vmax.f32 %v67, 0.0
    %v73 = vadd.f32 %v72, 0.0
    %s74 = scalar_lea.vmem %s0, 2
    %v75 = vld [vmem:[%s74] sm:$0x3]
    %v77 = vsel %vm28, %v75, 0
    %79 = vmatprep.subr.bf16.mxu0 0
    %80 = vmatpush1.bf16.msra.mxu0 %v77
    %81 = vmatprep.subr.bf16.mxu0 0
    %82 = vmatpush1.bf16.msra.mxu0 0
    %83 = vmatprep.subr.bf16.mxu0 0
    %84 = vmatpush1.bf16.msra.mxu0 0
    %85 = vmatprep.subr.bf16.mxu0 0
    %86 = vmatpush1.bf16.msra.mxu0 0
    %87 = vmatprep.subr.bf16.mxu0 0
    %88 = vmatpush1.bf16.msra.mxu0 0
    %89 = vmatprep.subr.bf16.mxu0 0
    %90 = vmatpush1.bf16.msra.mxu0 0
    %91 = vmatprep.subr.bf16.mxu0 0
    %92 = vmatpush1.bf16.msra.mxu0 0
    %93 = vmatprep.subr.bf16.mxu0 0
    %94 = vmatpush1.bf16.msra.mxu0 0
    %95 = vmatprep.subr.bf16.mxu0 0
    %96 = vmatpush1.bf16.msra.mxu0 0
    %97 = vmatprep.subr.bf16.mxu0 0
    %98 = vmatpush1.bf16.msra.mxu0 0
    %99 = vmatprep.subr.bf16.mxu0 0
    %100 = vmatpush1.bf16.msra.mxu0 0
    %101 = vmatprep.subr.bf16.mxu0 0
    %102 = vmatpush1.bf16.msra.mxu0 0
    %103 = vmatprep.subr.bf16.mxu0 0
    %104 = vmatpush1.bf16.msra.mxu0 0
    %105 = vmatprep.subr.bf16.mxu0 0
    %106 = vmatpush1.bf16.msra.mxu0 0
    %107 = vmatprep.subr.bf16.mxu0 0
    %108 = vmatpush1.bf16.msra.mxu0 0
    %109 = vmatprep.subr.bf16.mxu0 0
    %110 = vmatpush1.bf16.msra.mxu0 0
    %111 = vmatprep.mubr.bf16.mxu0 0
    %112 = vmatmul.mubr.bf16.gmra.mrb[0].mxu0 %v26
    %v113 = vpop.f32.mrb[0].mxu0
    %v114 = vadd.f32 %v22, %v113
    %v115 = vpop.f32.mrb[0].mxu0
    %v116 = vpop.f32.mrb[0].mxu0
    %v117 = vpop.f32.mrb[0].mxu0
    %118 = vdwg.mxu0
    %v119 = vmax.f32 %v114, 0.0
    %v120 = vadd.f32 %v73, %v119
    %s121 = scalar_lea.vmem %s0, 4
    %v122 = vld [vmem:[%s121] sm:$0x3]
    %v124 = vsel %vm28, %v122, 0
    %126 = vmatprep.subr.bf16.mxu0 0
    %127 = vmatpush1.bf16.msra.mxu0 %v124
    %128 = vmatprep.subr.bf16.mxu0 0
    %129 = vmatpush1.bf16.msra.mxu0 0
    %130 = vmatprep.subr.bf16.mxu0 0
    %131 = vmatpush1.bf16.msra.mxu0 0
    %132 = vmatprep.subr.bf16.mxu0 0
    %133 = vmatpush1.bf16.msra.mxu0 0
    %134 = vmatprep.subr.bf16.mxu0 0
    %135 = vmatpush1.bf16.msra.mxu0 0
    %136 = vmatprep.subr.bf16.mxu0 0
    %137 = vmatpush1.bf16.msra.mxu0 0
    %138 = vmatprep.subr.bf16.mxu0 0
    %139 = vmatpush1.bf16.msra.mxu0 0
    %140 = vmatprep.subr.bf16.mxu0 0
    %141 = vmatpush1.bf16.msra.mxu0 0
    %142 = vmatprep.subr.bf16.mxu0 0
    %143 = vmatpush1.bf16.msra.mxu0 0
    %144 = vmatprep.subr.bf16.mxu0 0
    %145 = vmatpush1.bf16.msra.mxu0 0
    %146 = vmatprep.subr.bf16.mxu0 0
    %147 = vmatpush1.bf16.msra.mxu0 0
    %148 = vmatprep.subr.bf16.mxu0 0
    %149 = vmatpush1.bf16.msra.mxu0 0
    %150 = vmatprep.subr.bf16.mxu0 0
    %151 = vmatpush1.bf16.msra.mxu0 0
    %152 = vmatprep.subr.bf16.mxu0 0
    %153 = vmatpush1.bf16.msra.mxu0 0
    %154 = vmatprep.subr.bf16.mxu0 0
    %155 = vmatpush1.bf16.msra.mxu0 0
    %156 = vmatprep.subr.bf16.mxu0 0
    %157 = vmatpush1.bf16.msra.mxu0 0
    %158 = vmatprep.mubr.bf16.mxu0 0
    %159 = vmatmul.mubr.bf16.gmra.mrb[0].mxu0 %v26
    %v160 = vpop.f32.mrb[0].mxu0
    %v161 = vadd.f32 %v22, %v160
    %v162 = vpop.f32.mrb[0].mxu0
    %v163 = vpop.f32.mrb[0].mxu0
    %v164 = vpop.f32.mrb[0].mxu0
    %165 = vdwg.mxu0
    %v166 = vmax.f32 %v161, 0.0
    %v167 = vadd.f32 %v120, %v166
    %s168 = scalar_lea.vmem %s0, 6
    %v169 = vld [vmem:[%s168] sm:$0x3]
    %v171 = vsel %vm28, %v169, 0
    %173 = vmatprep.subr.bf16.mxu0 0
    %174 = vmatpush1.bf16.msra.mxu0 %v171
    %175 = vmatprep.subr.bf16.mxu0 0
    %176 = vmatpush1.bf16.msra.mxu0 0
    %177 = vmatprep.subr.bf16.mxu0 0
    %178 = vmatpush1.bf16.msra.mxu0 0
    %179 = vmatprep.subr.bf16.mxu0 0
    %180 = vmatpush1.bf16.msra.mxu0 0
    %181 = vmatprep.subr.bf16.mxu0 0
    %182 = vmatpush1.bf16.msra.mxu0 0
    %183 = vmatprep.subr.bf16.mxu0 0
    %184 = vmatpush1.bf16.msra.mxu0 0
    %185 = vmatprep.subr.bf16.mxu0 0
    %186 = vmatpush1.bf16.msra.mxu0 0
    %187 = vmatprep.subr.bf16.mxu0 0
    %188 = vmatpush1.bf16.msra.mxu0 0
    %189 = vmatprep.subr.bf16.mxu0 0
    %190 = vmatpush1.bf16.msra.mxu0 0
    %191 = vmatprep.subr.bf16.mxu0 0
    %192 = vmatpush1.bf16.msra.mxu0 0
    %193 = vmatprep.subr.bf16.mxu0 0
    %194 = vmatpush1.bf16.msra.mxu0 0
    %195 = vmatprep.subr.bf16.mxu0 0
    %196 = vmatpush1.bf16.msra.mxu0 0
    %197 = vmatprep.subr.bf16.mxu0 0
    %198 = vmatpush1.bf16.msra.mxu0 0
    %199 = vmatprep.subr.bf16.mxu0 0
    %200 = vmatpush1.bf16.msra.mxu0 0
    %201 = vmatprep.subr.bf16.mxu0 0
    %202 = vmatpush1.bf16.msra.mxu0 0
    %203 = vmatprep.subr.bf16.mxu0 0
    %204 = vmatpush1.bf16.msra.mxu0 0
    %205 = vmatprep.mubr.bf16.mxu0 0
    %206 = vmatmul.mubr.bf16.gmra.mrb[0].mxu0 %v26
    %v207 = vpop.f32.mrb[0].mxu0
    %v208 = vadd.f32 %v22, %v207
    %v209 = vpop.f32.mrb[0].mxu0
    %v210 = vpop.f32.mrb[0].mxu0
    %v211 = vpop.f32.mrb[0].mxu0
    %212 = vdwg.mxu0
    %v213 = vmax.f32 %v208, 0.0
    %v214 = vadd.f32 %v167, %v213
    %v215 = vmul.f32 %v214, 0.25
    %216 = vst [vmem:[#allocation2] sm:$0xff] %v215
    // Predicated region
    $region14: #{tpu_custom_call.1} parent=1 // pred_check
      _
    $region15: #{tpu_custom_call.1} parent=1 // pred_check_branch
      %218 = sbr.rel (0) target = $region17
    $region16: #{tpu_custom_call.1} parent=1 // pred_region
      %s220 = ssub.s32 128, 128
      %221 = vsyncadd [#allocation3], %s220
      %s223 = sshll.u32 [#allocation2], 4
      %s224 = int_to_ptr.vmem [resolvable:$true] %s223
      %226 = dma.vmem_to_hbm [thread:$0]  %s224, 128, %s3, [#allocation3]
    $region17: #{tpu_custom_call.1} parent=1 // pred_fallthru
      _
    // Predicated region
    $region18: #{tpu_custom_call.1} parent=1 // pred_check
      _
    $region19: #{tpu_custom_call.1} parent=1 // pred_check_branch
      %228 = sbr.rel (0) target = $region21
    $region20: #{tpu_custom_call.1} parent=1 // pred_region
      %229 = dma.done [#allocation3], 128
    $region21: #{tpu_custom_call.1} parent=1 // pred_fallthru
      _
    %230 = vsyncpa [#allocation3], 1

</llo_original>
